<compile_context>
chip_gen: v7x
topology: tpu7x:2x2x1
jax: 0.10.0
libtpu: 0.0.40
codegen_flags: <defaults>
</compile_context>

<pallas_src>
import jax
import jax.numpy as jnp
from jax import lax
from jax.experimental import pallas as pl
from jax.experimental.pallas import tpu as pltpu


def _round_up(x: int, m: int) -> int:
    return (x + m - 1) // m * m


def _make_kernel(B: int, row_tile: int, n_steps: int, need_mask: bool):
    f32 = jnp.float32

    def kernel(ye_ref, yt_ref, xr_ref, xt_ref, c_ref, c0_ref,
               ysq_ref, xsq_ref, csum_ref, csumsq_ref):
        s = pl.program_id(0)          # core / split axis ("parallel")
        t = pl.program_id(1)          # reduction axis   ("arbitrary")

        @pl.when(t == 0)
        def _init():
            ysq_ref[...] = jnp.zeros_like(ysq_ref)
            xsq_ref[...] = jnp.zeros_like(xsq_ref)
            csum_ref[...] = jnp.zeros_like(csum_ref)
            csumsq_ref[...] = jnp.zeros_like(csumsq_ref)

        dy = ye_ref[...].astype(f32) - yt_ref[...].astype(f32)
        dx = xr_ref[...].astype(f32) - xt_ref[...].astype(f32)
        # Shift the code tile by the first row (variance is shift-invariant);
        # greatly reduces one-pass sum/sumsq cancellation for offset-heavy codes.
        c = c_ref[...].astype(f32) - c0_ref[...].astype(f32)

        if need_mask:
            # Ragged last tile and/or duplicated (clamped) tiles: zero rows >= B.
            base = (s * n_steps + t) * row_tile
            rows = lax.broadcasted_iota(jnp.int32, (row_tile, 1), 0) + base
            valid = rows < B
            dy = jnp.where(valid, dy, 0.0)
            dx = jnp.where(valid, dx, 0.0)
            c = jnp.where(valid, c, 0.0)

        # Per-column partial sums; wide VPU adds that hide under DMA.
        ysq_ref[...] += jnp.sum(dy * dy, axis=0, keepdims=True)
        xsq_ref[...] += jnp.sum(dx * dx, axis=0, keepdims=True)
        csum_ref[...] += jnp.sum(c, axis=0, keepdims=True)
        csumsq_ref[...] += jnp.sum(c * c, axis=0, keepdims=True)

    return kernel


def loss_func(y_star_est, y_star, code, x_reconst, x):
    """Pallas TPU equivalent of LossFunc.forward. Returns a scalar float32."""
    B, d_y = y_star_est.shape
    d_x = x_reconst.shape[1]
    d_c = code.shape[1]

    streams = (y_star_est, y_star, x_reconst, x, code)
    itemsizes = [jnp.dtype(a.dtype).itemsize for a in streams]
    align = 16 if min(itemsizes) < 4 else 8       # bf16 sublane packing

    # ---- tile sizing from the true in-flight footprint vs scoped VMEM ----
    try:
        vmem_cap = int(pltpu.get_tpu_info().vmem_capacity_bytes)
    except Exception:
        vmem_cap = 64 * 1024 * 1024               # conservative (v7x per-TC)
    vmem_limit = min(int(vmem_cap * 0.65), 100 * 1024 * 1024)

    bytes_per_row = (d_y * (itemsizes[0] + itemsizes[1])
                     + d_x * (itemsizes[2] + itemsizes[3])
                     + d_c * itemsizes[4])
    # 2 pipeline buffers per stream; spend ~60% of the scoped limit on tiles.
    budget_rows = max(
        align, (int(0.6 * vmem_limit) // (2 * bytes_per_row)) // align * align)
    # Keep ~4 tiles for large inputs (DMA pipelining + 2-way core split) but
    # don't shred small problems into sub-512 KiB tiles.
    want_rows = _round_up(pl.cdiv(B, 4), align)
    if want_rows * bytes_per_row < 512 * 1024:
        want_rows = _round_up(B, align)
    row_tile = max(align, min(budget_rows, want_rows))

    n_tiles = pl.cdiv(B, row_tile)
    n_split = 2 if n_tiles >= 2 else 1            # v7x: one split per TensorCore
    n_steps = pl.cdiv(n_tiles, n_split)
    need_clamp = n_split * n_steps > n_tiles
    need_mask = n_split * n_steps * row_tile != B

    if need_clamp:
        def row_idx(s, t):
            return (jnp.minimum(s * n_steps + t, n_tiles - 1), 0)
    else:
        def row_idx(s, t):
            return (s * n_steps + t, 0)

    in_specs = [
        pl.BlockSpec((row_tile, d_y), row_idx),        # y_star_est
        pl.BlockSpec((row_tile, d_y), row_idx),        # y_star
        pl.BlockSpec((row_tile, d_x), row_idx),        # x_reconst
        pl.BlockSpec((row_tile, d_x), row_idx),        # x
        pl.BlockSpec((row_tile, d_c), row_idx),        # code
        pl.BlockSpec((1, d_c), lambda s, t: (0, 0)),   # code[0:1] (shift row)
    ]
    # Per-split per-column partial sums; block index constant along t so the
    # output blocks stay resident in VMEM and act as accumulators.
    out_specs = [
        pl.BlockSpec((None, 1, d_y), lambda s, t: (s, 0, 0)),
        pl.BlockSpec((None, 1, d_x), lambda s, t: (s, 0, 0)),
        pl.BlockSpec((None, 1, d_c), lambda s, t: (s, 0, 0)),
        pl.BlockSpec((None, 1, d_c), lambda s, t: (s, 0, 0)),
    ]
    out_shape = (
        jax.ShapeDtypeStruct((n_split, 1, d_y), jnp.float32),   # sum (dy)^2
        jax.ShapeDtypeStruct((n_split, 1, d_x), jnp.float32),   # sum (dx)^2
        jax.ShapeDtypeStruct((n_split, 1, d_c), jnp.float32),   # sum (c - c0)
        jax.ShapeDtypeStruct((n_split, 1, d_c), jnp.float32),   # sum (c - c0)^2
    )

    bytes_accessed = (B * bytes_per_row + d_c * itemsizes[4]
                      + 4 * n_split * (d_y + d_x + 2 * d_c))
    cost = pl.CostEstimate(
        flops=int(B * (3 * (d_y + d_x) + 4 * d_c)),
        transcendentals=0,
        bytes_accessed=int(bytes_accessed))

    kernel = _make_kernel(B, row_tile, n_steps, need_mask)

    ysq, xsq, csum, csumsq = pl.pallas_call(
        kernel,
        out_shape=out_shape,
        grid_spec=pltpu.PrefetchScalarGridSpec(
            num_scalar_prefetch=0,
            grid=(n_split, n_steps),
            in_specs=in_specs,
            out_specs=out_specs,
        ),
        compiler_params=pltpu.CompilerParams(
            dimension_semantics=("parallel", "arbitrary"),
            vmem_limit_bytes=vmem_limit),
        cost_estimate=cost,
    )(y_star_est, y_star, x_reconst, x, code, code[0:1])

    # ---- tiny finalize in plain JAX (weights, variance, sqrt, combine) ----
    esti_loss = jnp.sum(ysq) / (B * d_y)
    reconst_loss = jnp.sum(xsq) / (B * d_x)

    cs = jnp.sum(csum, axis=(0, 1))        # (d_c,)
    css = jnp.sum(csumsq, axis=(0, 1))     # (d_c,)
    # Unbiased variance; B == 1 gives 0/0 -> NaN, matching torch.std(ddof=1).
    var = (css - cs * cs / B) / (B - 1)
    std = jnp.sqrt(jnp.maximum(var, 0.0))  # max(NaN, 0) stays NaN
    code_loss = jnp.sum(std)

    return esti_loss + code_loss + reconst_loss


def _reference(y_star_est, y_star, code, x_reconst, x):
    esti = jnp.mean((y_star_est - y_star) ** 2)
    code_loss = jnp.sum(jnp.std(code, axis=0, ddof=1))
    rec = jnp.mean((x_reconst - x) ** 2)
    return esti + code_loss + rec


if __name__ == "__main__":
    key = jax.random.PRNGKey(0)
    k1, k2, k3, k4, k5 = jax.random.split(key, 5)

    B = 8           # batch
    D_Y = 32        # y_star feature dim
    D_CODE = 16     # latent code dim
    D_X = 64        # reconstruction feature dim

    y_star_est = jax.random.normal(k1, (B, D_Y), dtype=jnp.float32)
    y_star     = jax.random.normal(k2, (B, D_Y), dtype=jnp.float32)
    code       = jax.random.normal(k3, (B, D_CODE), dtype=jnp.float32)
    x_reconst  = jax.random.normal(k4, (B, D_X), dtype=jnp.float32)
    x          = jax.random.normal(k5, (B, D_X), dtype=jnp.float32)

    out = loss_func(y_star_est, y_star, code, x_reconst, x)
    jax.block_until_ready(out)

    ref = _reference(y_star_est, y_star, code, x_reconst, x)
    assert jnp.allclose(out, ref, rtol=1e-5, atol=1e-5), (out, ref)

    print("KERNEL_OK")
</pallas_src>

<mosaic_0001>
module attributes {stable_mosaic.version = 11 : i64} {
  func.func @kernel(%arg0: i32, %arg1: i32, %arg2: memref<8x32xf32, #tpu.memory_space<vmem>>, %arg3: memref<8x32xf32, #tpu.memory_space<vmem>>, %arg4: memref<8x64xf32, #tpu.memory_space<vmem>>, %arg5: memref<8x64xf32, #tpu.memory_space<vmem>>, %arg6: memref<8x16xf32, #tpu.memory_space<vmem>>, %arg7: memref<1x16xf32, #tpu.memory_space<vmem>>, %arg8: memref<1x1x32xf32, #tpu.memory_space<vmem>>, %arg9: memref<1x1x64xf32, #tpu.memory_space<vmem>>, %arg10: memref<1x1x16xf32, #tpu.memory_space<vmem>>, %arg11: memref<1x1x16xf32, #tpu.memory_space<vmem>>) attributes {dimension_semantics = [#tpu.dimension_semantics<parallel>, #tpu.dimension_semantics<arbitrary>], iteration_bounds = array<i64: 1, 1>, scalar_prefetch = 0 : i64, scratch_operands = 0 : i64, tpu.core_type = #tpu.core_type<tc>, window_params = [{transform_indices = @transform_0, window_bounds = array<i64: 8, 32>}, {transform_indices = @transform_1, window_bounds = array<i64: 8, 32>}, {transform_indices = @transform_2, window_bounds = array<i64: 8, 64>}, {transform_indices = @transform_3, window_bounds = array<i64: 8, 64>}, {transform_indices = @transform_4, window_bounds = array<i64: 8, 16>}, {pipeline_mode = #tpu.pipeline_mode<synchronous>, transform_indices = @transform_5, window_bounds = array<i64: 1, 16>}, {transform_indices = @transform_6, window_bounds = array<i64: 1, 1, 32>}, {transform_indices = @transform_7, window_bounds = array<i64: 1, 1, 64>}, {transform_indices = @transform_8, window_bounds = array<i64: 1, 1, 16>}, {transform_indices = @transform_9, window_bounds = array<i64: 1, 1, 16>}]} {
    %c0_i32 = arith.constant 0 : i32
    %0 = arith.cmpi eq, %arg1, %c0_i32 : i32
    %1 = arith.extui %0 : i1 to i32
    %c0_i32_0 = arith.constant 0 : i32
    %2 = arith.cmpi ne, %1, %c0_i32_0 : i32
    scf.if %2 {
      %cst_39 = arith.constant 0.000000e+00 : f32
      %48 = vector.broadcast %cst_39 : f32 to vector<1x32xf32>
      %c0_40 = arith.constant 0 : index
      %c0_41 = arith.constant 0 : index
      %c0_42 = arith.constant 0 : index
      %49 = vector.load %arg8[%c0_40, %c0_41, %c0_42] : memref<1x1x32xf32, #tpu.memory_space<vmem>>, vector<1x1x32xf32>
      %50 = vector.shape_cast %49 : vector<1x1x32xf32> to vector<1x32xf32>
      %51 = vector.shape_cast %48 : vector<1x32xf32> to vector<1x1x32xf32>
      tpu.vector_store %arg8[%c0_40, %c0_41, %c0_42], %51 {strides = array<i32>} : memref<1x1x32xf32, #tpu.memory_space<vmem>>, vector<1x1x32xf32>,
      %cst_43 = arith.constant 0.000000e+00 : f32
      %52 = vector.broadcast %cst_43 : f32 to vector<1x64xf32>
      %c0_44 = arith.constant 0 : index
      %c0_45 = arith.constant 0 : index
      %c0_46 = arith.constant 0 : index
      %53 = vector.load %arg9[%c0_44, %c0_45, %c0_46] : memref<1x1x64xf32, #tpu.memory_space<vmem>>, vector<1x1x64xf32>
      %54 = vector.shape_cast %53 : vector<1x1x64xf32> to vector<1x64xf32>
      %55 = vector.shape_cast %52 : vector<1x64xf32> to vector<1x1x64xf32>
      tpu.vector_store %arg9[%c0_44, %c0_45, %c0_46], %55 {strides = array<i32>} : memref<1x1x64xf32, #tpu.memory_space<vmem>>, vector<1x1x64xf32>,
      %cst_47 = arith.constant 0.000000e+00 : f32
      %56 = vector.broadcast %cst_47 : f32 to vector<1x16xf32>
      %c0_48 = arith.constant 0 : index
      %c0_49 = arith.constant 0 : index
      %c0_50 = arith.constant 0 : index
      %57 = vector.load %arg10[%c0_48, %c0_49, %c0_50] : memref<1x1x16xf32, #tpu.memory_space<vmem>>, vector<1x1x16xf32>
      %58 = vector.shape_cast %57 : vector<1x1x16xf32> to vector<1x16xf32>
      %59 = vector.shape_cast %56 : vector<1x16xf32> to vector<1x1x16xf32>
      tpu.vector_store %arg10[%c0_48, %c0_49, %c0_50], %59 {strides = array<i32>} : memref<1x1x16xf32, #tpu.memory_space<vmem>>, vector<1x1x16xf32>,
      %cst_51 = arith.constant 0.000000e+00 : f32
      %60 = vector.broadcast %cst_51 : f32 to vector<1x16xf32>
      %c0_52 = arith.constant 0 : index
      %c0_53 = arith.constant 0 : index
      %c0_54 = arith.constant 0 : index
      %61 = vector.load %arg11[%c0_52, %c0_53, %c0_54] : memref<1x1x16xf32, #tpu.memory_space<vmem>>, vector<1x1x16xf32>
      %62 = vector.shape_cast %61 : vector<1x1x16xf32> to vector<1x16xf32>
      %63 = vector.shape_cast %60 : vector<1x16xf32> to vector<1x1x16xf32>
      tpu.vector_store %arg11[%c0_52, %c0_53, %c0_54], %63 {strides = array<i32>} : memref<1x1x16xf32, #tpu.memory_space<vmem>>, vector<1x1x16xf32>,
    } else {
    }
    %c0 = arith.constant 0 : index
    %c0_1 = arith.constant 0 : index
    %3 = vector.load %arg2[%c0, %c0_1] : memref<8x32xf32, #tpu.memory_space<vmem>>, vector<8x32xf32>
    %c0_2 = arith.constant 0 : index
    %c0_3 = arith.constant 0 : index
    %4 = vector.load %arg3[%c0_2, %c0_3] : memref<8x32xf32, #tpu.memory_space<vmem>>, vector<8x32xf32>
    %5 = arith.subf %3, %4 : vector<8x32xf32>
    %c0_4 = arith.constant 0 : index
    %c0_5 = arith.constant 0 : index
    %6 = vector.load %arg4[%c0_4, %c0_5] : memref<8x64xf32, #tpu.memory_space<vmem>>, vector<8x64xf32>
    %c0_6 = arith.constant 0 : index
    %c0_7 = arith.constant 0 : index
    %7 = vector.load %arg5[%c0_6, %c0_7] : memref<8x64xf32, #tpu.memory_space<vmem>>, vector<8x64xf32>
    %8 = arith.subf %6, %7 : vector<8x64xf32>
    %c0_8 = arith.constant 0 : index
    %c0_9 = arith.constant 0 : index
    %9 = vector.load %arg6[%c0_8, %c0_9] : memref<8x16xf32, #tpu.memory_space<vmem>>, vector<8x16xf32>
    %c0_10 = arith.constant 0 : index
    %c0_11 = arith.constant 0 : index
    %10 = vector.load %arg7[%c0_10, %c0_11] : memref<1x16xf32, #tpu.memory_space<vmem>>, vector<1x16xf32>
    %11 = vector.broadcast %10 : vector<1x16xf32> to vector<8x16xf32>
    %12 = arith.subf %9, %11 : vector<8x16xf32>
    %c0_12 = arith.constant 0 : index
    %c0_13 = arith.constant 0 : index
    %c0_14 = arith.constant 0 : index
    %13 = vector.load %arg8[%c0_12, %c0_13, %c0_14] : memref<1x1x32xf32, #tpu.memory_space<vmem>>, vector<1x1x32xf32>
    %14 = vector.shape_cast %13 : vector<1x1x32xf32> to vector<1x32xf32>
    %15 = arith.mulf %5, %5 : vector<8x32xf32>
    %cst = arith.constant dense<0.000000e+00> : vector<32xf32>
    %16 = vector.multi_reduction <add>, %15, %cst [0] : vector<8x32xf32> to vector<32xf32>
    %17 = vector.shape_cast %16 : vector<32xf32> to vector<1x32xf32>
    %18 = arith.addf %14, %17 : vector<1x32xf32>
    %c0_15 = arith.constant 0 : index
    %c0_16 = arith.constant 0 : index
    %c0_17 = arith.constant 0 : index
    %19 = vector.load %arg8[%c0_15, %c0_16, %c0_17] : memref<1x1x32xf32, #tpu.memory_space<vmem>>, vector<1x1x32xf32>
    %20 = vector.shape_cast %19 : vector<1x1x32xf32> to vector<1x32xf32>
    %21 = vector.shape_cast %18 : vector<1x32xf32> to vector<1x1x32xf32>
    tpu.vector_store %arg8[%c0_15, %c0_16, %c0_17], %21 {strides = array<i32>} : memref<1x1x32xf32, #tpu.memory_space<vmem>>, vector<1x1x32xf32>,
    %c0_18 = arith.constant 0 : index
    %c0_19 = arith.constant 0 : index
    %c0_20 = arith.constant 0 : index
    %22 = vector.load %arg9[%c0_18, %c0_19, %c0_20] : memref<1x1x64xf32, #tpu.memory_space<vmem>>, vector<1x1x64xf32>
    %23 = vector.shape_cast %22 : vector<1x1x64xf32> to vector<1x64xf32>
    %24 = arith.mulf %8, %8 : vector<8x64xf32>
    %cst_21 = arith.constant dense<0.000000e+00> : vector<64xf32>
    %25 = vector.multi_reduction <add>, %24, %cst_21 [0] : vector<8x64xf32> to vector<64xf32>
    %26 = vector.shape_cast %25 : vector<64xf32> to vector<1x64xf32>
    %27 = arith.addf %23, %26 : vector<1x64xf32>
    %c0_22 = arith.constant 0 : index
    %c0_23 = arith.constant 0 : index
    %c0_24 = arith.constant 0 : index
    %28 = vector.load %arg9[%c0_22, %c0_23, %c0_24] : memref<1x1x64xf32, #tpu.memory_space<vmem>>, vector<1x1x64xf32>
    %29 = vector.shape_cast %28 : vector<1x1x64xf32> to vector<1x64xf32>
    %30 = vector.shape_cast %27 : vector<1x64xf32> to vector<1x1x64xf32>
    tpu.vector_store %arg9[%c0_22, %c0_23, %c0_24], %30 {strides = array<i32>} : memref<1x1x64xf32, #tpu.memory_space<vmem>>, vector<1x1x64xf32>,
    %c0_25 = arith.constant 0 : index
    %c0_26 = arith.constant 0 : index
    %c0_27 = arith.constant 0 : index
    %31 = vector.load %arg10[%c0_25, %c0_26, %c0_27] : memref<1x1x16xf32, #tpu.memory_space<vmem>>, vector<1x1x16xf32>
    %32 = vector.shape_cast %31 : vector<1x1x16xf32> to vector<1x16xf32>
    %cst_28 = arith.constant dense<0.000000e+00> : vector<16xf32>
    %33 = vector.multi_reduction <add>, %12, %cst_28 [0] : vector<8x16xf32> to vector<16xf32>
    %34 = vector.shape_cast %33 : vector<16xf32> to vector<1x16xf32>
    %35 = arith.addf %32, %34 : vector<1x16xf32>
    %c0_29 = arith.constant 0 : index
    %c0_30 = arith.constant 0 : index
    %c0_31 = arith.constant 0 : index
    %36 = vector.load %arg10[%c0_29, %c0_30, %c0_31] : memref<1x1x16xf32, #tpu.memory_space<vmem>>, vector<1x1x16xf32>
    %37 = vector.shape_cast %36 : vector<1x1x16xf32> to vector<1x16xf32>
    %38 = vector.shape_cast %35 : vector<1x16xf32> to vector<1x1x16xf32>
    tpu.vector_store %arg10[%c0_29, %c0_30, %c0_31], %38 {strides = array<i32>} : memref<1x1x16xf32, #tpu.memory_space<vmem>>, vector<1x1x16xf32>,
    %c0_32 = arith.constant 0 : index
    %c0_33 = arith.constant 0 : index
    %c0_34 = arith.constant 0 : index
    %39 = vector.load %arg11[%c0_32, %c0_33, %c0_34] : memref<1x1x16xf32, #tpu.memory_space<vmem>>, vector<1x1x16xf32>
    %40 = vector.shape_cast %39 : vector<1x1x16xf32> to vector<1x16xf32>
    %41 = arith.mulf %12, %12 : vector<8x16xf32>
    %cst_35 = arith.constant dense<0.000000e+00> : vector<16xf32>
    %42 = vector.multi_reduction <add>, %41, %cst_35 [0] : vector<8x16xf32> to vector<16xf32>
    %43 = vector.shape_cast %42 : vector<16xf32> to vector<1x16xf32>
    %44 = arith.addf %40, %43 : vector<1x16xf32>
    %c0_36 = arith.constant 0 : index
    %c0_37 = arith.constant 0 : index
    %c0_38 = arith.constant 0 : index
    %45 = vector.load %arg11[%c0_36, %c0_37, %c0_38] : memref<1x1x16xf32, #tpu.memory_space<vmem>>, vector<1x1x16xf32>
    %46 = vector.shape_cast %45 : vector<1x1x16xf32> to vector<1x16xf32>
    %47 = vector.shape_cast %44 : vector<1x16xf32> to vector<1x1x16xf32>
    tpu.vector_store %arg11[%c0_36, %c0_37, %c0_38], %47 {strides = array<i32>} : memref<1x1x16xf32, #tpu.memory_space<vmem>>, vector<1x1x16xf32>,
    return
  }
  func.func @transform_0(%arg0: i32, %arg1: i32) -> (i32, i32) {
    %c1_i32 = arith.constant 1 : i32
    %0 = arith.muli %arg0, %c1_i32 : i32
    %1 = arith.addi %0, %arg1 : i32
    %c0_i32 = arith.constant 0 : i32
    %c0_i32_0 = arith.constant 0 : i32
    return %1, %c0_i32 : i32, i32
  }
  func.func @transform_1(%arg0: i32, %arg1: i32) -> (i32, i32) {
    %c1_i32 = arith.constant 1 : i32
    %0 = arith.muli %arg0, %c1_i32 : i32
    %1 = arith.addi %0, %arg1 : i32
    %c0_i32 = arith.constant 0 : i32
    %c0_i32_0 = arith.constant 0 : i32
    return %1, %c0_i32 : i32, i32
  }
  func.func @transform_2(%arg0: i32, %arg1: i32) -> (i32, i32) {
    %c1_i32 = arith.constant 1 : i32
    %0 = arith.muli %arg0, %c1_i32 : i32
    %1 = arith.addi %0, %arg1 : i32
    %c0_i32 = arith.constant 0 : i32
    %c0_i32_0 = arith.constant 0 : i32
    return %1, %c0_i32 : i32, i32
  }
  func.func @transform_3(%arg0: i32, %arg1: i32) -> (i32, i32) {
    %c1_i32 = arith.constant 1 : i32
    %0 = arith.muli %arg0, %c1_i32 : i32
    %1 = arith.addi %0, %arg1 : i32
    %c0_i32 = arith.constant 0 : i32
    %c0_i32_0 = arith.constant 0 : i32
    return %1, %c0_i32 : i32, i32
  }
  func.func @transform_4(%arg0: i32, %arg1: i32) -> (i32, i32) {
    %c1_i32 = arith.constant 1 : i32
    %0 = arith.muli %arg0, %c1_i32 : i32
    %1 = arith.addi %0, %arg1 : i32
    %c0_i32 = arith.constant 0 : i32
    %c0_i32_0 = arith.constant 0 : i32
    return %1, %c0_i32 : i32, i32
  }
  func.func @transform_5(%arg0: i32, %arg1: i32) -> (i32, i32) {
    %c0_i32 = arith.constant 0 : i32
    %c0_i32_0 = arith.constant 0 : i32
    %c0_i32_1 = arith.constant 0 : i32
    return %c0_i32, %c0_i32_0 : i32, i32
  }
  func.func @transform_6(%arg0: i32, %arg1: i32) -> (i32, i32, i32) {
    %c0_i32 = arith.constant 0 : i32
    %c0_i32_0 = arith.constant 0 : i32
    %c0_i32_1 = arith.constant 0 : i32
    return %arg0, %c0_i32, %c0_i32_0 : i32, i32, i32
  }
  func.func @transform_7(%arg0: i32, %arg1: i32) -> (i32, i32, i32) {
    %c0_i32 = arith.constant 0 : i32
    %c0_i32_0 = arith.constant 0 : i32
    %c0_i32_1 = arith.constant 0 : i32
    return %arg0, %c0_i32, %c0_i32_0 : i32, i32, i32
  }
  func.func @transform_8(%arg0: i32, %arg1: i32) -> (i32, i32, i32) {
    %c0_i32 = arith.constant 0 : i32
    %c0_i32_0 = arith.constant 0 : i32
    %c0_i32_1 = arith.constant 0 : i32
    return %arg0, %c0_i32, %c0_i32_0 : i32, i32, i32
  }
  func.func @transform_9(%arg0: i32, %arg1: i32) -> (i32, i32, i32) {
    %c0_i32 = arith.constant 0 : i32
    %c0_i32_0 = arith.constant 0 : i32
    %c0_i32_1 = arith.constant 0 : i32
    return %arg0, %c0_i32, %c0_i32_0 : i32, i32, i32
  }
}

</mosaic_0001>

<llo_original>
// kernel: tpu_custom_call.1
$region0: #{tpu_custom_call.1}
  #allocation0 [shape = 'u32[]', space=smem, size = 0x4, offset = 0x4, fixed_abs, tag = 'smem constant byte address 0x4 - core index']
  #allocation1 [shape = 'u32[144,128]{1,0:T(1,128)}', space=vmem, size = 0x12000, scoped, tag = 'internal scratch']
  %s0 = inlined_call_operand.hbm [shape: f32[8,32], index: 0, kind: input, shape index: {}]
  %s1 = inlined_call_operand.hbm [shape: f32[8,32], index: 1, kind: input, shape index: {}]
  %s2 = inlined_call_operand.hbm [shape: f32[8,64], index: 2, kind: input, shape index: {}]
  %s3 = inlined_call_operand.vmem [shape: f32[8,64], index: 3, kind: input, shape index: {}]
  %s4 = inlined_call_operand.hbm [shape: f32[8,16], index: 4, kind: input, shape index: {}]
  %s5 = inlined_call_operand.vmem [shape: f32[1,16], index: 5, kind: input, shape index: {}]
  %s6 = inlined_call_operand.hbm [shape: f32[1,1,32], index: 6, kind: output, shape index: {0}]
  %s7 = inlined_call_operand.hbm [shape: f32[1,1,64], index: 7, kind: output, shape index: {1}]
  %s8 = inlined_call_operand.hbm [shape: f32[1,1,16], index: 8, kind: output, shape index: {2}]
  %s9 = inlined_call_operand.hbm [shape: f32[1,1,16], index: 9, kind: output, shape index: {3}]
  %10 = xla_tuple %s6, %s7, %s8, %s9
  %s11 = sld [smem:[#allocation0]]
  $region78: #{tpu_custom_call.1} parent=0
    _
  %s13 = ssub.s32 1, %s11
  %s14 = scalar_select 0, %s13, %s11
  $region1: #{tpu_custom_call.1} parent=0
    #allocation2 [shape = 'u8[4096]{0}', space=vmem, size = 0x1000, scoped, tag = 'input window, operand 0, single buffered']
    #allocation3 [shape = 's32[1]{0}', space=sflag, size = 0x4, scoped, tag = 'scoped memory for tpu_custom_call.1']
    #allocation4 [shape = 's32[1]{0}', space=sflag, size = 0x4, scoped, tag = 'scoped memory for tpu_custom_call.1']
    #allocation5 [shape = 'u8[4096]{0}', space=vmem, size = 0x1000, scoped, tag = 'input window, operand 1, single buffered']
    #allocation6 [shape = 's32[1]{0}', space=sflag, size = 0x4, scoped, tag = 'scoped memory for tpu_custom_call.1']
    #allocation7 [shape = 'u8[4096]{0}', space=vmem, size = 0x1000, scoped, tag = 'input window, operand 2, single buffered']
    #allocation8 [shape = 'u8[4096]{0}', space=vmem, size = 0x1000, scoped, tag = 'input window, operand 4, single buffered']
    #allocation9 [shape = 's32[1]{0}', space=sflag, size = 0x4, scoped, tag = 'scoped memory for tpu_custom_call.1']
    #allocation10 [shape = 'u8[512]{0}', space=vmem, size = 0x400, scoped, tag = 'output window, operand 0, single buffered']
    #allocation11 [shape = 'u8[512]{0}', space=vmem, size = 0x400, scoped, tag = 'output window, operand 1, single buffered']
    #allocation12 [shape = 's32[1]{0}', space=sflag, size = 0x4, scoped, tag = 'scoped memory for tpu_custom_call.1']
    #allocation13 [shape = 'u8[512]{0}', space=vmem, size = 0x400, scoped, tag = 'output window, operand 2, single buffered']
    #allocation14 [shape = 'u8[512]{0}', space=vmem, size = 0x400, scoped, tag = 'output window, operand 3, single buffered']
    #allocation15 [shape = 's32[1]{0}', space=sflag, size = 0x4, scoped, tag = 'scoped memory for tpu_custom_call.1']
    %15 = vsyncpa [#allocation3], 0
    %16 = vsyncpa [#allocation6], 0
    %17 = vsyncpa [#allocation9], 0
    %18 = vsyncpa [#allocation4], 0
    %19 = vsyncpa [#allocation12], 0
    %20 = vsyncpa [#allocation15], 0
    // Predicated region
    $region2: #{tpu_custom_call.1} parent=1 // pred_check
      _
    $region3: #{tpu_custom_call.1} parent=1 // pred_check_branch
      %22 = sbr.rel (0) target = $region5
    $region4: #{tpu_custom_call.1} parent=1 // pred_region
      %s23 = sadd.s32 0, 0
      %s25 = ssub.s32 128, 128
      %26 = vsyncadd [#allocation3], %s25
      %s27 = smul.addr %s23, 128
      %s28 = scalar_lea.hbm %s0, %s27
      %s30 = sshll.u32 [#allocation2], 4
      %s31 = int_to_ptr.vmem [resolvable:$true] %s30
      %33 = dma.hbm_to_vmem [thread:$0]  %s28, 128, %s31, [#allocation3]
    $region5: #{tpu_custom_call.1} parent=1 // pred_fallthru
      _
    // Predicated region
    $region6: #{tpu_custom_call.1} parent=1 // pred_check
      _
    $region7: #{tpu_custom_call.1} parent=1 // pred_check_branch
      %35 = sbr.rel (0) target = $region9
    $region8: #{tpu_custom_call.1} parent=1 // pred_region
      %s36 = sadd.s32 0, 0
      %s38 = ssub.s32 128, 128
      %39 = vsyncadd [#allocation6], %s38
      %s40 = smul.addr %s36, 128
      %s41 = scalar_lea.hbm %s1, %s40
      %s43 = sshll.u32 [#allocation5], 4
      %s44 = int_to_ptr.vmem [resolvable:$true] %s43
      %46 = dma.hbm_to_vmem [thread:$0]  %s41, 128, %s44, [#allocation6]
    $region9: #{tpu_custom_call.1} parent=1 // pred_fallthru
      _
    // Predicated region
    $region10: #{tpu_custom_call.1} parent=1 // pred_check
      _
    $region11: #{tpu_custom_call.1} parent=1 // pred_check_branch
      %48 = sbr.rel (0) target = $region13
    $region12: #{tpu_custom_call.1} parent=1 // pred_region
      %s49 = sadd.s32 0, 0
      %s51 = ssub.s32 128, 128
      %52 = vsyncadd [#allocation6], %s51
      %s53 = smul.addr %s49, 128
      %s54 = scalar_lea.hbm %s2, %s53
      %s56 = sshll.u32 [#allocation7], 4
      %s57 = int_to_ptr.vmem [resolvable:$true] %s56
      %59 = dma.hbm_to_vmem [thread:$0]  %s54, 128, %s57, [#allocation6]
    $region13: #{tpu_custom_call.1} parent=1 // pred_fallthru
      _
    // Predicated region
    $region14: #{tpu_custom_call.1} parent=1 // pred_check
      _
    $region15: #{tpu_custom_call.1} parent=1 // pred_check_branch
      %61 = sbr.rel (0) target = $region17
    $region16: #{tpu_custom_call.1} parent=1 // pred_region
      %s62 = sadd.s32 0, 0
      %p63 = scmp.lt.s32.totalorder %s62, 0
      %s64 = scalar_select %p63, %s62, 0
      %s65 = smul.addr %s64, 8
      %s66 = scalar_lea.vmem %s3, %s65
      %s67 = sadd.s32 0, 0
    $region17: #{tpu_custom_call.1} parent=1 // pred_fallthru
      _
    // Predicated region
    $region18: #{tpu_custom_call.1} parent=1 // pred_check
      _
    $region19: #{tpu_custom_call.1} parent=1 // pred_check_branch
      %69 = sbr.rel (0) target = $region21
    $region20: #{tpu_custom_call.1} parent=1 // pred_region
      %s70 = sadd.s32 0, 0
      %s72 = ssub.s32 128, 128
      %73 = vsyncadd [#allocation9], %s72
      %s74 = smul.addr %s70, 128
      %s75 = scalar_lea.hbm %s4, %s74
      %s77 = sshll.u32 [#allocation8], 4
      %s78 = int_to_ptr.vmem [resolvable:$true] %s77
      %80 = dma.hbm_to_vmem [thread:$0]  %s75, 128, %s78, [#allocation9]
    $region21: #{tpu_custom_call.1} parent=1 // pred_fallthru
      _
    // Predicated region
    $region22: #{tpu_custom_call.1} parent=1 // pred_check
      _
    $region23: #{tpu_custom_call.1} parent=1 // pred_check_branch
      %82 = sbr.rel (0) target = $region25
    $region24: #{tpu_custom_call.1} parent=1 // pred_region
      _
    $region25: #{tpu_custom_call.1} parent=1 // pred_fallthru
      _
    // Predicated region
    $region26: #{tpu_custom_call.1} parent=1 // pred_check
      _
    $region27: #{tpu_custom_call.1} parent=1 // pred_check_branch
      %84 = sbr.rel (0) target = $region29
    $region28: #{tpu_custom_call.1} parent=1 // pred_region
      %85 = dma.done [#allocation3], 128
    $region29: #{tpu_custom_call.1} parent=1 // pred_fallthru
      _
    // Predicated region
    $region30: #{tpu_custom_call.1} parent=1 // pred_check
      _
    $region31: #{tpu_custom_call.1} parent=1 // pred_check_branch
      %87 = sbr.rel (0) target = $region33
    $region32: #{tpu_custom_call.1} parent=1 // pred_region
      %88 = dma.done [#allocation6], 128
    $region33: #{tpu_custom_call.1} parent=1 // pred_fallthru
      _
    // Predicated region
    $region34: #{tpu_custom_call.1} parent=1 // pred_check
      _
    $region35: #{tpu_custom_call.1} parent=1 // pred_check_branch
      %90 = sbr.rel (0) target = $region37
    $region36: #{tpu_custom_call.1} parent=1 // pred_region
      %91 = dma.done [#allocation6], 128
    $region37: #{tpu_custom_call.1} parent=1 // pred_fallthru
      _
    // Predicated region
    $region38: #{tpu_custom_call.1} parent=1 // pred_check
      _
    $region39: #{tpu_custom_call.1} parent=1 // pred_check_branch
      %93 = sbr.rel (0) target = $region41
    $region40: #{tpu_custom_call.1} parent=1 // pred_region
      %94 = dma.done [#allocation9], 128
    $region41: #{tpu_custom_call.1} parent=1 // pred_fallthru
      _
    %s95 = sadd.s32 0, 0
    %p96 = scmp.lt.s32.totalorder %s95, 0
    %s97 = scalar_select %p96, %s95, 0
    %s98 = smul.addr %s97, 8
    %s99 = scalar_lea.vmem %s3, %s98
    %s100 = sadd.s32 0, 0
    %s101 = sadd.s32 0, 0
    %s102 = sadd.s32 0, 0
    %s103 = sadd.s32 0, 0
    %p104 = scmp.lt.s32.totalorder %s103, 0
    %s105 = scalar_select %p104, %s103, 0
    %s106 = smul.addr %s105, 8
    %s107 = scalar_lea.vmem %s3, %s106
    %s108 = sadd.s32 0, 0
    %s109 = sadd.s32 0, 0
    %p110 = scmp.eq.s32.totalorder 0, 0
    // Predicated region
    $region42: #{tpu_custom_call.1} parent=1 // pred_check
      %p111 = pneg %p110
    $region43: #{tpu_custom_call.1} parent=1 // pred_check_branch
      %113 = sbr.rel (%p111) target = $region45
    $region44: #{tpu_custom_call.1} parent=1 // pred_region
      %vm114 = vcmask 253952
      %115 = vst.msk [vmem:[#allocation10] sm:$0x1] %vm114, 0.0
      %vm116 = vcmask 516096
      %117 = vst.msk [vmem:[#allocation11] sm:$0x1] %vm116, 0.0
      %vm118 = vcmask 122880
      %119 = vst.msk [vmem:[#allocation13] sm:$0x1] %vm118, 0.0
      %120 = vst.msk [vmem:[#allocation14] sm:$0x1] %vm118, 0.0
    $region45: #{tpu_custom_call.1} parent=1 // pred_fallthru
      _
    %v121 = vld [vmem:[#allocation2] sm:$0xff]
    %v122 = vld [vmem:[#allocation5] sm:$0xff]
    %v123 = vsub.f32 %v121, %v122
    %v124 = vld [vmem:[#allocation7] sm:$0xff]
    %v125 = vld [vmem:[%s107] sm:$0xff]
    %v126 = vsub.f32 %v124, %v125
    %v127 = vld [vmem:[#allocation8] sm:$0xff]
    %v128 = vld [vmem:[%s5] sm:$0x1]
    %v130 = vlaneseq
    %v131 = vshrl.u32 %v130, 7
    %v132 = vsub.s32 0, %v131
    %v133 = vrot.slane %v128, %v132
    %v135 = vsub.f32 %v127, %v133
    %v136 = vld [vmem:[#allocation10] sm:$0x1]
    %v137 = vmul.f32 %v123, %v123
    %vm138 = vcmask 261120
    %v139 = vsel %vm138, %v137, 0.0
    %v140 = vrot.slane %v139, 4
    %v141 = vadd.f32 %v139, %v140
    %v142 = vrot.slane %v141, 2
    %v143 = vadd.f32 %v141, %v142
    %v144 = vrot.slane %v143, 1
    %v145 = vadd.f32 %v143, %v144
    %v146 = vadd.f32 %v136, %v145
    %vm147 = vcmask 253952
    %148 = vst.msk [vmem:[#allocation10] sm:$0x1] %vm147, %v146
    %v149 = vld [vmem:[#allocation11] sm:$0x1]
    %v150 = vmul.f32 %v126, %v126
    %vm151 = vcmask 523264
    %v152 = vsel %vm151, %v150, 0.0
    %v153 = vrot.slane %v152, 4
    %v154 = vadd.f32 %v152, %v153
    %v155 = vrot.slane %v154, 2
    %v156 = vadd.f32 %v154, %v155
    %v157 = vrot.slane %v156, 1
    %v158 = vadd.f32 %v156, %v157
    %v159 = vadd.f32 %v149, %v158
    %vm160 = vcmask 516096
    %161 = vst.msk [vmem:[#allocation11] sm:$0x1] %vm160, %v159
    %v162 = vld [vmem:[#allocation13] sm:$0x1]
    %vm163 = vcmask 130048
    %v164 = vsel %vm163, %v135, 0.0
    %v165 = vrot.slane %v164, 4
    %v166 = vadd.f32 %v164, %v165
    %v167 = vrot.slane %v166, 2
    %v168 = vadd.f32 %v166, %v167
    %v169 = vrot.slane %v168, 1
    %v170 = vadd.f32 %v168, %v169
    %v171 = vadd.f32 %v162, %v170
    %vm172 = vcmask 122880
    %173 = vst.msk [vmem:[#allocation13] sm:$0x1] %vm172, %v171
    %v174 = vld [vmem:[#allocation14] sm:$0x1]
    %v175 = vmul.f32 %v135, %v135
    %v176 = vsel %vm163, %v175, 0.0
    %v177 = vrot.slane %v176, 4
    %v178 = vadd.f32 %v176, %v177
    %v179 = vrot.slane %v178, 2
    %v180 = vadd.f32 %v178, %v179
    %v181 = vrot.slane %v180, 1
    %v182 = vadd.f32 %v180, %v181
    %v183 = vadd.f32 %v174, %v182
    %184 = vst.msk [vmem:[#allocation14] sm:$0x1] %vm172, %v183
    // Predicated region
    $region46: #{tpu_custom_call.1} parent=1 // pred_check
      _
    $region47: #{tpu_custom_call.1} parent=1 // pred_check_branch
      %186 = sbr.rel (0) target = $region49
    $region48: #{tpu_custom_call.1} parent=1 // pred_region
      %s188 = ssub.s32 16, 16
      %189 = vsyncadd [#allocation4], %s188
      %s191 = sshll.u32 [#allocation10], 4
      %s192 = int_to_ptr.vmem [resolvable:$true] %s191
      %194 = dma.vmem_to_hbm [thread:$0]  %s192, 16, %s6, [#allocation4]
    $region49: #{tpu_custom_call.1} parent=1 // pred_fallthru
      _
    // Predicated region
    $region50: #{tpu_custom_call.1} parent=1 // pred_check
      _
    $region51: #{tpu_custom_call.1} parent=1 // pred_check_branch
      %196 = sbr.rel (0) target = $region53
    $region52: #{tpu_custom_call.1} parent=1 // pred_region
      %s198 = ssub.s32 16, 16
      %199 = vsyncadd [#allocation12], %s198
      %s201 = sshll.u32 [#allocation11], 4
      %s202 = int_to_ptr.vmem [resolvable:$true] %s201
      %204 = dma.vmem_to_hbm [thread:$0]  %s202, 16, %s7, [#allocation12]
    $region53: #{tpu_custom_call.1} parent=1 // pred_fallthru
      _
    // Predicated region
    $region54: #{tpu_custom_call.1} parent=1 // pred_check
      _
    $region55: #{tpu_custom_call.1} parent=1 // pred_check_branch
      %206 = sbr.rel (0) target = $region57
    $region56: #{tpu_custom_call.1} parent=1 // pred_region
      %s208 = ssub.s32 16, 16
      %209 = vsyncadd [#allocation12], %s208
      %s211 = sshll.u32 [#allocation13], 4
      %s212 = int_to_ptr.vmem [resolvable:$true] %s211
      %214 = dma.vmem_to_hbm [thread:$0]  %s212, 16, %s8, [#allocation12]
    $region57: #{tpu_custom_call.1} parent=1 // pred_fallthru
      _
    // Predicated region
    $region58: #{tpu_custom_call.1} parent=1 // pred_check
      _
    $region59: #{tpu_custom_call.1} parent=1 // pred_check_branch
      %216 = sbr.rel (0) target = $region61
    $region60: #{tpu_custom_call.1} parent=1 // pred_region
      %s218 = ssub.s32 16, 16
      %219 = vsyncadd [#allocation15], %s218
      %s221 = sshll.u32 [#allocation14], 4
      %s222 = int_to_ptr.vmem [resolvable:$true] %s221
      %224 = dma.vmem_to_hbm [thread:$0]  %s222, 16, %s9, [#allocation15]
    $region61: #{tpu_custom_call.1} parent=1 // pred_fallthru
      _
    // Predicated region
    $region62: #{tpu_custom_call.1} parent=1 // pred_check
      _
    $region63: #{tpu_custom_call.1} parent=1 // pred_check_branch
      %226 = sbr.rel (0) target = $region65
    $region64: #{tpu_custom_call.1} parent=1 // pred_region
      %227 = dma.done [#allocation4], 16
    $region65: #{tpu_custom_call.1} parent=1 // pred_fallthru
      _
    // Predicated region
    $region66: #{tpu_custom_call.1} parent=1 // pred_check
      _
    $region67: #{tpu_custom_call.1} parent=1 // pred_check_branch
      %229 = sbr.rel (0) target = $region69
    $region68: #{tpu_custom_call.1} parent=1 // pred_region
      %230 = dma.done [#allocation12], 16
    $region69: #{tpu_custom_call.1} parent=1 // pred_fallthru
      _
    // Predicated region
    $region70: #{tpu_custom_call.1} parent=1 // pred_check
      _
    $region71: #{tpu_custom_call.1} parent=1 // pred_check_branch
      %232 = sbr.rel (0) target = $region73
    $region72: #{tpu_custom_call.1} parent=1 // pred_region
      %233 = dma.done [#allocation12], 16
    $region73: #{tpu_custom_call.1} parent=1 // pred_fallthru
      _
    // Predicated region
    $region74: #{tpu_custom_call.1} parent=1 // pred_check
      _
    $region75: #{tpu_custom_call.1} parent=1 // pred_check_branch
      %235 = sbr.rel (0) target = $region77
    $region76: #{tpu_custom_call.1} parent=1 // pred_region
      %236 = dma.done [#allocation15], 16
    $region77: #{tpu_custom_call.1} parent=1 // pred_fallthru
      _
    %237 = vsyncpa [#allocation3], 1
    %238 = vsyncpa [#allocation6], 1
    %239 = vsyncpa [#allocation9], 1
    %240 = vsyncpa [#allocation4], 1
    %241 = vsyncpa [#allocation12], 1
    %242 = vsyncpa [#allocation15], 1

</llo_original>
